<compile_context>
chip_gen: v7x
topology: tpu7x:2x2x1
jax: 0.10.0
libtpu: 0.0.40
codegen_flags: <defaults>
</compile_context>

<pallas_src>
import functools

import jax
import jax.numpy as jnp
import numpy as np
from jax.experimental import pallas as pl
from jax.experimental.pallas import tpu as pltpu


# ---------------------------------------------------------------------------
# Helpers
# ---------------------------------------------------------------------------
def _round_up(x, m):
    return (x + m - 1) // m * m


def _largest_divisor_at_most(n, cap):
    cap = max(1, min(n, cap))
    for d in range(cap, 0, -1):
        if n % d == 0:
            return d
    return 1


def _vmem_budgets():
    """Generation-aware VMEM budgets.

    v5e / v6e: 128 MiB VMEM, 1 TensorCore  -> large slabs, no forced grid split.
    v7x      :  64 MiB VMEM, 2 TensorCores -> smaller slabs, >= 2 grid steps.
    """
    vmem_bytes = None
    try:
        vmem_bytes = int(pltpu.get_tpu_info().vmem_capacity_bytes)
    except Exception:
        vmem_bytes = None
    if vmem_bytes is not None and vmem_bytes >= 100 * 1024 * 1024:
        return {"vmem_limit": 96 * 1024 * 1024,
                "x_budget": 64 * 1024 * 1024,
                "multi_core": False}
    # v7x-like or unknown: stay conservative, assume two TensorCores.
    return {"vmem_limit": 48 * 1024 * 1024,
            "x_budget": 24 * 1024 * 1024,
            "multi_core": True}


# ---------------------------------------------------------------------------
# Kernels
# ---------------------------------------------------------------------------
def _se_fused_kernel(x_ref, w1_ref, b1_ref, w2_ref, b2_ref, o_ref, *, inv_s):
    # x_ref: (nb, C, S) -- last dim is the FULL spatial extent, so no OOB.
    emb = jnp.sum(x_ref[...], axis=2, dtype=jnp.float32) * inv_s        # (nb, C)
    h = jnp.dot(emb, w1_ref[...], preferred_element_type=jnp.float32) + b1_ref[...]
    h = jnp.maximum(h, 0.0)                                              # ReLU
    s = jnp.dot(h, w2_ref[...], preferred_element_type=jnp.float32) + b2_ref[...]
    s = jax.nn.sigmoid(s)                                                # (nb, C)
    # Per-vreg cast of the gate; no full-slab f32 temporary.
    o_ref[...] = (x_ref[...] * s[:, :, None].astype(x_ref.dtype)).astype(o_ref.dtype)


def _se_reduce_gate_kernel(x_ref, w1_ref, b1_ref, w2_ref, b2_ref, gate_ref,
                           *, inv_s, s_rem):
    # grid = (N, num_tiles).  gate_ref (1, C) stays resident across the
    # "arbitrary" spatial-tile axis: it holds channel sums until the last tile,
    # where the excitation MLP overwrites it with the sigmoid gate.
    j = pl.program_id(1)
    nt = pl.num_programs(1)

    @pl.when(j == 0)
    def _():
        gate_ref[...] = jnp.zeros_like(gate_ref)

    x = x_ref[...]                                                       # (1, C, ts)
    if s_rem:
        # Mask the undefined tail of the final (partial) tile.
        lane = jax.lax.broadcasted_iota(jnp.int32, x.shape, 2)
        limit = jnp.where(j == nt - 1, s_rem, x.shape[2])
        x = jnp.where(lane < limit, x, jnp.zeros_like(x))
    gate_ref[...] += jnp.sum(x, axis=2, dtype=jnp.float32)

    @pl.when(j == nt - 1)
    def _():
        emb = gate_ref[...] * inv_s                                      # (1, C)
        h = jnp.dot(emb, w1_ref[...], preferred_element_type=jnp.float32) + b1_ref[...]
        h = jnp.maximum(h, 0.0)
        s = jnp.dot(h, w2_ref[...], preferred_element_type=jnp.float32) + b2_ref[...]
        gate_ref[...] = jax.nn.sigmoid(s)


def _se_scale_kernel(x_ref, s_ref, o_ref):
    # Plain load / multiply / store epilogue.  OOB tail writes of the final
    # partial tile are masked automatically; the garbage lanes never land.
    s = s_ref[...]                                                       # (1, C) f32
    o_ref[...] = (x_ref[...] * s[:, :, None].astype(x_ref.dtype)).astype(o_ref.dtype)


# ---------------------------------------------------------------------------
# Wrapper
# ---------------------------------------------------------------------------
def se_block_forward(x, w1, b1, w2, b2, *, force_two_pass=False,
                     x_tile_budget_bytes=None):
    """SEBlock forward.

    x  : (N, C, H, W) or (N, C, D, H, W)
    w1 : (Cr, C)  -- PyTorch nn.Linear layout (out_features, in_features)
    b1 : (Cr,)
    w2 : (C, Cr)
    b2 : (C,)
    """
    if x.ndim not in (4, 5):
        raise ValueError("Input tensor must be 4-dimensional or 5-dimensional.")

    orig_shape = x.shape
    N, C = x.shape[0], x.shape[1]
    S = int(np.prod(x.shape[2:]))
    x3 = x.reshape(N, C, S)
    itemsize = jnp.dtype(x3.dtype).itemsize

    budgets = _vmem_budgets()
    vmem_limit = budgets["vmem_limit"]
    x_budget = (x_tile_budget_bytes if x_tile_budget_bytes is not None
                else budgets["x_budget"])
    multi_core = budgets["multi_core"]

    # Weights as (in, out) so the kernels need no transpose; pad Cr to a
    # multiple of 8 (exact: zero weights + zero bias -> ReLU(0) = 0 -> no
    # contribution through the zero rows of w2).
    Cr = w1.shape[0]
    Cr_pad = max(8, _round_up(Cr, 8))
    w1_t = jnp.zeros((C, Cr_pad), jnp.float32).at[:, :Cr].set(
        jnp.asarray(w1, jnp.float32).T)
    b1_2d = jnp.zeros((1, Cr_pad), jnp.float32).at[0, :Cr].set(
        jnp.asarray(b1, jnp.float32))
    w2_t = jnp.zeros((Cr_pad, C), jnp.float32).at[:Cr, :].set(
        jnp.asarray(w2, jnp.float32).T)
    b2_2d = jnp.asarray(b2, jnp.float32).reshape(1, C)

    inv_s = 1.0 / float(S)

    def compiler(sem):
        return pltpu.CompilerParams(dimension_semantics=sem,
                                    vmem_limit_bytes=vmem_limit)

    # VMEM footprint of one batch row (compiler pads sublanes to 8, lanes to 128).
    slab_vmem = _round_up(C, 8) * _round_up(S, 128) * itemsize
    nb_cap = x_budget // max(1, 4 * slab_vmem)      # 2x(in) + 2x(out) double-buffered
    use_fused = ((not force_two_pass) and nb_cap >= 1
                 and not (multi_core and N == 1))   # keep both v7x TCs busy

    if use_fused:
        # ----- fused single-read path (small per-batch slabs) -----
        if multi_core and N >= 2:
            nb_cap = min(nb_cap, N // 2)            # >= 2 grid steps for the 2nd TC
        nb = _largest_divisor_at_most(N, nb_cap)

        out3 = pl.pallas_call(
            functools.partial(_se_fused_kernel, inv_s=inv_s),
            out_shape=jax.ShapeDtypeStruct((N, C, S), x3.dtype),
            grid_spec=pltpu.PrefetchScalarGridSpec(
                num_scalar_prefetch=0,
                grid=(N // nb,),
                in_specs=[
                    pl.BlockSpec((nb, C, S), lambda i: (i, 0, 0)),
                    pl.BlockSpec((C, Cr_pad), lambda i: (0, 0)),
                    pl.BlockSpec((1, Cr_pad), lambda i: (0, 0)),
                    pl.BlockSpec((Cr_pad, C), lambda i: (0, 0)),
                    pl.BlockSpec((1, C), lambda i: (0, 0)),
                ],
                out_specs=pl.BlockSpec((nb, C, S), lambda i: (i, 0, 0)),
            ),
            compiler_params=compiler(("parallel",)),
        )(x3, w1_t, b1_2d, w2_t, b2_2d)
        return out3.reshape(orig_shape)

    # ----- two-pass tiled path (large spatial extents) -----
    row_bytes = _round_up(C, 8) * itemsize

    # Pass 1 (read-only stream, tiny resident (1, C) accumulator): budget / 2.
    ts1_cap = max(128, (x_budget // 2) // max(1, row_bytes) // 128 * 128)
    ts1 = S if S <= ts1_cap else ts1_cap
    nt1 = pl.cdiv(S, ts1)
    s_rem1 = (S % ts1) if ts1 < S else 0

    gate = pl.pallas_call(
        functools.partial(_se_reduce_gate_kernel, inv_s=inv_s, s_rem=s_rem1),
        out_shape=jax.ShapeDtypeStruct((N, C), jnp.float32),
        grid_spec=pltpu.PrefetchScalarGridSpec(
            num_scalar_prefetch=0,
            grid=(N, nt1),
            in_specs=[
                pl.BlockSpec((1, C, ts1), lambda i, j: (i, 0, j)),
                pl.BlockSpec((C, Cr_pad), lambda i, j: (0, 0)),
                pl.BlockSpec((1, Cr_pad), lambda i, j: (0, 0)),
                pl.BlockSpec((Cr_pad, C), lambda i, j: (0, 0)),
                pl.BlockSpec((1, C), lambda i, j: (0, 0)),
            ],
            out_specs=pl.BlockSpec((1, C), lambda i, j: (i, 0)),
        ),
        compiler_params=compiler(("parallel", "arbitrary")),
    )(x3, w1_t, b1_2d, w2_t, b2_2d)

    # Pass 2 (in + out streams): budget / 4.
    ts2_cap = max(128, (x_budget // 4) // max(1, row_bytes) // 128 * 128)
    ts2 = S if S <= ts2_cap else ts2_cap
    nt2 = pl.cdiv(S, ts2)

    out3 = pl.pallas_call(
        _se_scale_kernel,
        out_shape=jax.ShapeDtypeStruct((N, C, S), x3.dtype),
        grid_spec=pltpu.PrefetchScalarGridSpec(
            num_scalar_prefetch=0,
            grid=(N, nt2),
            in_specs=[
                pl.BlockSpec((1, C, ts2), lambda i, j: (i, 0, j)),
                pl.BlockSpec((1, C), lambda i, j: (i, 0)),
            ],
            out_specs=pl.BlockSpec((1, C, ts2), lambda i, j: (i, 0, j)),
        ),
        compiler_params=compiler(("parallel", "parallel")),
    )(x3, gate)
    return out3.reshape(orig_shape)


# ---------------------------------------------------------------------------
# Pure-JAX reference
# ---------------------------------------------------------------------------
def se_block_reference(x, w1, b1, w2, b2):
    N, C = x.shape[0], x.shape[1]
    spatial_axes = tuple(range(2, x.ndim))
    emb = jnp.mean(x, axis=spatial_axes)                  # (N, C)
    h = jnp.maximum(emb @ w1.T + b1, 0.0)                 # (N, Cr)
    s = jax.nn.sigmoid(h @ w2.T + b2)                     # (N, C)
    return x * s.reshape((N, C) + (1,) * len(spatial_axes))


if __name__ == "__main__":
    # SEBlock(in_channels=8, reduction=4)
    N, C, H, W = 2, 8, 16, 16
    reduction = 4
    Cr = C // reduction

    key = jax.random.PRNGKey(0)
    kx, kw1, kb1, kw2, kb2, kx5, kxo = jax.random.split(key, 7)

    x = jax.random.normal(kx, (N, C, H, W), dtype=jnp.float32)
    w1 = jax.random.normal(kw1, (Cr, C), dtype=jnp.float32) * 0.1
    b1 = jax.random.normal(kb1, (Cr,), dtype=jnp.float32) * 0.1
    w2 = jax.random.normal(kw2, (C, Cr), dtype=jnp.float32) * 0.1
    b2 = jax.random.normal(kb2, (C,), dtype=jnp.float32) * 0.1

    ref = jax.block_until_ready(se_block_reference(x, w1, b1, w2, b2))

    # Fused single-read path (small slab -> default).
    out_fused = jax.block_until_ready(se_block_forward(x, w1, b1, w2, b2))
    assert out_fused.shape == x.shape
    np.testing.assert_allclose(np.asarray(out_fused), np.asarray(ref),
                               rtol=1e-5, atol=1e-5)

    # Two-pass tiled path (what large spatial extents take automatically).
    out_tiled = jax.block_until_ready(
        se_block_forward(x, w1, b1, w2, b2, force_two_pass=True))
    np.testing.assert_allclose(np.asarray(out_tiled), np.asarray(ref),
                               rtol=1e-5, atol=1e-5)

    # Non-128-aligned spatial extent on the fused path (masked tail stores).
    xo = jax.random.normal(kxo, (N, C, 15, 15), dtype=jnp.float32)
    refo = jax.block_until_ready(se_block_reference(xo, w1, b1, w2, b2))
    outo = jax.block_until_ready(se_block_forward(xo, w1, b1, w2, b2))
    np.testing.assert_allclose(np.asarray(outo), np.asarray(refo),
                               rtol=1e-5, atol=1e-5)

    # Two-pass path with a tiny budget to force multi-tile + partial last tile
    # (exercises the in-kernel iota mask and masked partial-tile writes).
    xt = jax.random.normal(kxo, (N, C, 17, 17), dtype=jnp.float32)
    reft = jax.block_until_ready(se_block_reference(xt, w1, b1, w2, b2))
    outt = jax.block_until_ready(
        se_block_forward(xt, w1, b1, w2, b2, force_two_pass=True,
                         x_tile_budget_bytes=8192))
    np.testing.assert_allclose(np.asarray(outt), np.asarray(reft),
                               rtol=1e-5, atol=1e-5)

    # 5-D input (N, C, D, H, W).
    x5 = jax.random.normal(kx5, (N, C, 4, 8, 8), dtype=jnp.float32)
    ref5 = jax.block_until_ready(se_block_reference(x5, w1, b1, w2, b2))
    out5 = jax.block_until_ready(se_block_forward(x5, w1, b1, w2, b2))
    np.testing.assert_allclose(np.asarray(out5), np.asarray(ref5),
                               rtol=1e-5, atol=1e-5)

    print("KERNEL_OK")
</pallas_src>

<mosaic_0001>
module attributes {stable_mosaic.version = 11 : i64} {
  func.func @_se_fused_kernel(%arg0: i32, %arg1: memref<1x8x256xf32, #tpu.memory_space<vmem>>, %arg2: memref<8x8xf32, #tpu.memory_space<vmem>>, %arg3: memref<1x8xf32, #tpu.memory_space<vmem>>, %arg4: memref<8x8xf32, #tpu.memory_space<vmem>>, %arg5: memref<1x8xf32, #tpu.memory_space<vmem>>, %arg6: memref<1x8x256xf32, #tpu.memory_space<vmem>>) attributes {dimension_semantics = [#tpu.dimension_semantics<parallel>], iteration_bounds = array<i64: 2>, scalar_prefetch = 0 : i64, scratch_operands = 0 : i64, tpu.core_type = #tpu.core_type<tc>, window_params = [{transform_indices = @transform_0, window_bounds = array<i64: 1, 8, 256>}, {pipeline_mode = #tpu.pipeline_mode<synchronous>, transform_indices = @transform_1, window_bounds = array<i64: 8, 8>}, {pipeline_mode = #tpu.pipeline_mode<synchronous>, transform_indices = @transform_2, window_bounds = array<i64: 1, 8>}, {pipeline_mode = #tpu.pipeline_mode<synchronous>, transform_indices = @transform_3, window_bounds = array<i64: 8, 8>}, {pipeline_mode = #tpu.pipeline_mode<synchronous>, transform_indices = @transform_4, window_bounds = array<i64: 1, 8>}, {transform_indices = @transform_5, window_bounds = array<i64: 1, 8, 256>}]} {
    %c0 = arith.constant 0 : index
    %c0_0 = arith.constant 0 : index
    %c0_1 = arith.constant 0 : index
    %0 = vector.load %arg1[%c0, %c0_0, %c0_1] : memref<1x8x256xf32, #tpu.memory_space<vmem>>, vector<1x8x256xf32>
    %cst = arith.constant dense<0.000000e+00> : vector<1x8xf32>
    %1 = vector.multi_reduction <add>, %0, %cst [2] : vector<1x8x256xf32> to vector<1x8xf32>
    %cst_2 = arith.constant 3.906250e-03 : f32
    %2 = vector.broadcast %cst_2 : f32 to vector<1x8xf32>
    %3 = arith.mulf %1, %2 : vector<1x8xf32>
    %c0_3 = arith.constant 0 : index
    %c0_4 = arith.constant 0 : index
    %4 = vector.load %arg2[%c0_3, %c0_4] : memref<8x8xf32, #tpu.memory_space<vmem>>, vector<8x8xf32>
    %cst_5 = arith.constant dense<0.000000e+00> : vector<1x8xf32>
    %5 = tpu.matmul %3, %4, %cst_5 {dimension_numbers = #tpu.dot_dimension_numbers<[1], [0], [0], [1], [0, 0, 1, 1], [], []>} : vector<1x8xf32>, vector<8x8xf32>, vector<1x8xf32> -> vector<1x8xf32>
    %c0_6 = arith.constant 0 : index
    %c0_7 = arith.constant 0 : index
    %6 = vector.load %arg3[%c0_6, %c0_7] : memref<1x8xf32, #tpu.memory_space<vmem>>, vector<1x8xf32>
    %7 = arith.addf %5, %6 : vector<1x8xf32>
    %cst_8 = arith.constant 0.000000e+00 : f32
    %8 = vector.broadcast %cst_8 : f32 to vector<1x8xf32>
    %9 = arith.maximumf %7, %8 : vector<1x8xf32>
    %c0_9 = arith.constant 0 : index
    %c0_10 = arith.constant 0 : index
    %10 = vector.load %arg4[%c0_9, %c0_10] : memref<8x8xf32, #tpu.memory_space<vmem>>, vector<8x8xf32>
    %cst_11 = arith.constant dense<0.000000e+00> : vector<1x8xf32>
    %11 = tpu.matmul %9, %10, %cst_11 {dimension_numbers = #tpu.dot_dimension_numbers<[1], [0], [0], [1], [0, 0, 1, 1], [], []>} : vector<1x8xf32>, vector<8x8xf32>, vector<1x8xf32> -> vector<1x8xf32>
    %c0_12 = arith.constant 0 : index
    %c0_13 = arith.constant 0 : index
    %12 = vector.load %arg5[%c0_12, %c0_13] : memref<1x8xf32, #tpu.memory_space<vmem>>, vector<1x8xf32>
    %13 = arith.addf %11, %12 : vector<1x8xf32>
    %14 = arith.negf %13 : vector<1x8xf32>
    %15 = math.exp %14 : vector<1x8xf32>
    %cst_14 = arith.constant 1.000000e+00 : f32
    %16 = vector.broadcast %cst_14 : f32 to vector<1x8xf32>
    %17 = arith.addf %16, %15 : vector<1x8xf32>
    %18 = arith.divf %16, %17 : vector<1x8xf32>
    %c0_15 = arith.constant 0 : index
    %c0_16 = arith.constant 0 : index
    %c0_17 = arith.constant 0 : index
    %19 = vector.load %arg1[%c0_15, %c0_16, %c0_17] : memref<1x8x256xf32, #tpu.memory_space<vmem>>, vector<1x8x256xf32>
    %20 = vector.shape_cast %18 : vector<1x8xf32> to vector<1x8x1xf32>
    %21 = vector.broadcast %20 : vector<1x8x1xf32> to vector<1x8x256xf32>
    %22 = arith.mulf %19, %21 : vector<1x8x256xf32>
    %c0_18 = arith.constant 0 : index
    %c0_19 = arith.constant 0 : index
    %c0_20 = arith.constant 0 : index
    %23 = vector.load %arg6[%c0_18, %c0_19, %c0_20] : memref<1x8x256xf32, #tpu.memory_space<vmem>>, vector<1x8x256xf32>
    tpu.vector_store %arg6[%c0_18, %c0_19, %c0_20], %22 {strides = array<i32>} : memref<1x8x256xf32, #tpu.memory_space<vmem>>, vector<1x8x256xf32>,
    return
  }
  func.func @transform_0(%arg0: i32) -> (i32, i32, i32) {
    %c0_i32 = arith.constant 0 : i32
    %c0_i32_0 = arith.constant 0 : i32
    %c0_i32_1 = arith.constant 0 : i32
    return %arg0, %c0_i32, %c0_i32_0 : i32, i32, i32
  }
  func.func @transform_1(%arg0: i32) -> (i32, i32) {
    %c0_i32 = arith.constant 0 : i32
    %c0_i32_0 = arith.constant 0 : i32
    %c0_i32_1 = arith.constant 0 : i32
    return %c0_i32, %c0_i32_0 : i32, i32
  }
  func.func @transform_2(%arg0: i32) -> (i32, i32) {
    %c0_i32 = arith.constant 0 : i32
    %c0_i32_0 = arith.constant 0 : i32
    %c0_i32_1 = arith.constant 0 : i32
    return %c0_i32, %c0_i32_0 : i32, i32
  }
  func.func @transform_3(%arg0: i32) -> (i32, i32) {
    %c0_i32 = arith.constant 0 : i32
    %c0_i32_0 = arith.constant 0 : i32
    %c0_i32_1 = arith.constant 0 : i32
    return %c0_i32, %c0_i32_0 : i32, i32
  }
  func.func @transform_4(%arg0: i32) -> (i32, i32) {
    %c0_i32 = arith.constant 0 : i32
    %c0_i32_0 = arith.constant 0 : i32
    %c0_i32_1 = arith.constant 0 : i32
    return %c0_i32, %c0_i32_0 : i32, i32
  }
  func.func @transform_5(%arg0: i32) -> (i32, i32, i32) {
    %c0_i32 = arith.constant 0 : i32
    %c0_i32_0 = arith.constant 0 : i32
    %c0_i32_1 = arith.constant 0 : i32
    return %arg0, %c0_i32, %c0_i32_0 : i32, i32, i32
  }
}

</mosaic_0001>

<llo_original>
// kernel: tpu_custom_call.1
$region0: #{tpu_custom_call.1}
  #allocation0 [shape = 'u32[]', space=smem, size = 0x4, offset = 0x4, fixed_abs, tag = 'smem constant byte address 0x4 - core index']
  #allocation1 [shape = 'u32[144,128]{1,0:T(1,128)}', space=vmem, size = 0x12000, scoped, tag = 'internal scratch']
  %s0 = inlined_call_operand.hbm [shape: f32[2,8,256], index: 0, kind: input, shape index: {}]
  %s1 = inlined_call_operand.hbm [shape: f32[8,8], index: 1, kind: input, shape index: {}]
  %s2 = inlined_call_operand.vmem [shape: f32[1,8], index: 2, kind: input, shape index: {}]
  %s3 = inlined_call_operand.vmem [shape: f32[8,8], index: 3, kind: input, shape index: {}]
  %s4 = inlined_call_operand.vmem [shape: f32[1,8], index: 4, kind: input, shape index: {}]
  %s5 = inlined_call_operand.hbm [shape: f32[2,8,256], index: 5, kind: output, shape index: {}]
  %s6 = sld [smem:[#allocation0]]
  $region61: #{tpu_custom_call.1} parent=0
    _
  %s8 = ssub.s32 1, %s6
  %s9 = scalar_select 0, %s8, %s6
  $region1: #{tpu_custom_call.1} parent=0
    #allocation2 [shape = 'u8[16384]{0}', space=vmem, size = 0x4000, scoped, tag = 'input window, operand 0']
    #allocation3 [shape = 's32[2]{0}', space=sflag, size = 0x8, scoped, tag = 'scoped memory for tpu_custom_call.1']
    #allocation4 [shape = 's32[2]{0}', space=sflag, size = 0x8, scoped, tag = 'scoped memory for tpu_custom_call.1']
    #allocation5 [shape = 'u8[4096]{0}', space=vmem, size = 0x1000, scoped, tag = 'input window, operand 1, single buffered']
    #allocation6 [shape = 's32[1]{0}', space=sflag, size = 0x4, scoped, tag = 'scoped memory for tpu_custom_call.1']
    #allocation7 [shape = 'u8[16384]{0}', space=vmem, size = 0x4000, scoped, tag = 'output window, operand 0']
    %10 = vsyncpa [#allocation3], 0
    %s11 = scalar_lea.sflag [#allocation3], 1
    %12 = vsyncpa %s11, 0
    %13 = vsyncpa [#allocation6], 0
    %14 = vsyncpa [#allocation4], 0
    %s15 = scalar_lea.sflag [#allocation4], 1
    %16 = vsyncpa %s15, 0
    loop: start=0, step=1, limit=4
    $region2: #{tpu_custom_call.1} parent=1 // loop_pre_header
      _
    $region3: #{tpu_custom_call.1} parent=1 // loop_header
      %s18 = sphi 0, %s22
      %p19 = scmp.ge.s32.totalorder %s18, 4
      %s28 = sphi 0, %s30
      %s31 = sphi 0, %s28
      %s32 = sphi 0, %s31
      %s48 = sphi 0, %s32
      %s52 = sphi 0, %s52
      %s54 = sphi 0, %s52
      %s55 = sphi 0, %s54
      %s69 = sphi 0, %s55
      %s73 = sphi 0, %s73
      %s75 = sphi 0, %s73
      %s76 = sphi 0, %s75
      %s90 = sphi 0, %s76
      %s94 = sphi 0, %s94
      %s96 = sphi 0, %s94
      %s97 = sphi 0, %s96
      %s111 = sphi 0, %s97
      %s115 = sphi 0, %s115
      %s117 = sphi 0, %s115
      %s118 = sphi 0, %s117
      %s132 = sphi 0, %s118
      %s138 = sphi 0, %s140
      %s141 = sphi 0, %s138
      %s142 = sphi 0, %s141
      %s158 = sphi 0, %s142
    $region4: #{tpu_custom_call.1} parent=1 // loop_header_branch
      %21 = sbr.rel (%p19) target = $region8
    $region5: #{tpu_custom_call.1} parent=1 // loop_body
      %s23 = ssub.s32 %s18, 1
      %s24 = ssub.s32 %s18, 2
      %s25 = sadd.s32 %s18, 1
      %s26 = ssub.s32 %s18, %s25
      %p27 = scmp.eq.s32.totalorder %s26, 0
      %s29 = sadd.s32 %s28, 1
      %s30 = scalar_select %p27, %s28, %s29
      %p33 = pneg %p27
      %p34 = scmp.eq.s32.totalorder %s18, 1
      %p35 = por %p33, %p34
      %p36 = scmp.ne.s32.totalorder %s28, %s31
      %p37 = scmp.eq.s32.totalorder %s18, 0
      %p38 = por %p36, %p37
      %p39 = scmp.ne.s32.totalorder %s28, %s31
      %p40 = scmp.eq.s32.totalorder %s23, 1
      %p41 = por %p39, %p40
      %p42 = scmp.ne.s32.totalorder %s31, %s32
      %p43 = scmp.eq.s32.totalorder %s23, 0
      %p44 = por %p42, %p43
      %p45 = scmp.ne.s32.totalorder %s31, %s32
      %p46 = scmp.eq.s32.totalorder %s24, 1
      %p47 = por %p45, %p46
      %p49 = scmp.ne.s32.totalorder %s32, %s48
      %p50 = scmp.eq.s32.totalorder %s24, 0
      %p51 = por %p49, %p50
      %s53 = sadd.s32 %s52, 1
      %p56 = scmp.eq.s32.totalorder %s18, 1
      %p57 = scmp.ne.s32.totalorder %s52, %s54
      %p58 = scmp.eq.s32.totalorder %s18, 0
      %p59 = por %p57, %p58
      %p60 = scmp.ne.s32.totalorder %s52, %s54
      %p61 = scmp.eq.s32.totalorder %s23, 1
      %p62 = por %p60, %p61
      %p63 = scmp.ne.s32.totalorder %s54, %s55
      %p64 = scmp.eq.s32.totalorder %s23, 0
      %p65 = por %p63, %p64
      %p66 = scmp.ne.s32.totalorder %s54, %s55
      %p67 = scmp.eq.s32.totalorder %s24, 1
      %p68 = por %p66, %p67
      %p70 = scmp.ne.s32.totalorder %s55, %s69
      %p71 = scmp.eq.s32.totalorder %s24, 0
      %p72 = por %p70, %p71
      %s74 = sadd.s32 %s73, 1
      %p77 = scmp.eq.s32.totalorder %s18, 1
      %p78 = scmp.ne.s32.totalorder %s73, %s75
      %p79 = scmp.eq.s32.totalorder %s18, 0
      %p80 = por %p78, %p79
      %p81 = scmp.ne.s32.totalorder %s73, %s75
      %p82 = scmp.eq.s32.totalorder %s23, 1
      %p83 = por %p81, %p82
      %p84 = scmp.ne.s32.totalorder %s75, %s76
      %p85 = scmp.eq.s32.totalorder %s23, 0
      %p86 = por %p84, %p85
      %p87 = scmp.ne.s32.totalorder %s75, %s76
      %p88 = scmp.eq.s32.totalorder %s24, 1
      %p89 = por %p87, %p88
      %p91 = scmp.ne.s32.totalorder %s76, %s90
      %p92 = scmp.eq.s32.totalorder %s24, 0
      %p93 = por %p91, %p92
      %s95 = sadd.s32 %s94, 1
      %p98 = scmp.eq.s32.totalorder %s18, 1
      %p99 = scmp.ne.s32.totalorder %s94, %s96
      %p100 = scmp.eq.s32.totalorder %s18, 0
      %p101 = por %p99, %p100
      %p102 = scmp.ne.s32.totalorder %s94, %s96
      %p103 = scmp.eq.s32.totalorder %s23, 1
      %p104 = por %p102, %p103
      %p105 = scmp.ne.s32.totalorder %s96, %s97
      %p106 = scmp.eq.s32.totalorder %s23, 0
      %p107 = por %p105, %p106
      %p108 = scmp.ne.s32.totalorder %s96, %s97
      %p109 = scmp.eq.s32.totalorder %s24, 1
      %p110 = por %p108, %p109
      %p112 = scmp.ne.s32.totalorder %s97, %s111
      %p113 = scmp.eq.s32.totalorder %s24, 0
      %p114 = por %p112, %p113
      %s116 = sadd.s32 %s115, 1
      %p119 = scmp.eq.s32.totalorder %s18, 1
      %p120 = scmp.ne.s32.totalorder %s115, %s117
      %p121 = scmp.eq.s32.totalorder %s18, 0
      %p122 = por %p120, %p121
      %p123 = scmp.ne.s32.totalorder %s115, %s117
      %p124 = scmp.eq.s32.totalorder %s23, 1
      %p125 = por %p123, %p124
      %p126 = scmp.ne.s32.totalorder %s117, %s118
      %p127 = scmp.eq.s32.totalorder %s23, 0
      %p128 = por %p126, %p127
      %p129 = scmp.ne.s32.totalorder %s117, %s118
      %p130 = scmp.eq.s32.totalorder %s24, 1
      %p131 = por %p129, %p130
      %p133 = scmp.ne.s32.totalorder %s118, %s132
      %p134 = scmp.eq.s32.totalorder %s24, 0
      %p135 = por %p133, %p134
      %s136 = ssub.s32 %s18, %s25
      %p137 = scmp.eq.s32.totalorder %s136, 0
      %s139 = sadd.s32 %s138, 1
      %s140 = scalar_select %p137, %s138, %s139
      %p143 = pneg %p137
      %p144 = scmp.eq.s32.totalorder %s18, 1
      %p145 = por %p143, %p144
      %p146 = scmp.ne.s32.totalorder %s138, %s141
      %p147 = scmp.eq.s32.totalorder %s18, 0
      %p148 = por %p146, %p147
      %p149 = scmp.ne.s32.totalorder %s138, %s141
      %p150 = scmp.eq.s32.totalorder %s23, 1
      %p151 = por %p149, %p150
      %p152 = scmp.ne.s32.totalorder %s141, %s142
      %p153 = scmp.eq.s32.totalorder %s23, 0
      %p154 = por %p152, %p153
      %p155 = scmp.ne.s32.totalorder %s141, %s142
      %p156 = scmp.eq.s32.totalorder %s24, 1
      %p157 = por %p155, %p156
      %p159 = scmp.ne.s32.totalorder %s142, %s158
      %p160 = scmp.eq.s32.totalorder %s24, 0
      %p161 = por %p159, %p160
      %p162 = scmp.le.s32.totalorder 1, %s18
      %p163 = scmp.lt.s32.totalorder %s18, 3
      %p164 = pnand %p162, %p163
      %p165 = pneg %p164
      // Predicated region
      $region9: #{tpu_custom_call.1} parent=5 // pred_check
        _
      $region10: #{tpu_custom_call.1} parent=5 // pred_check_branch
        %167 = sbr.rel (%p164) target = $region12
      $region11: #{tpu_custom_call.1} parent=5 // pred_region
        %s168 = ssub.s32 %s18, 1
        // Predicated region
        $region13: #{tpu_custom_call.1} parent=11 // pred_check
          %p169 = pneg %p65
        $region14: #{tpu_custom_call.1} parent=11 // pred_check_branch
          %171 = sbr.rel (%p169) target = $region16
        $region15: #{tpu_custom_call.1} parent=11 // pred_region
          %s173 = ssub.s32 128, 128
          %174 = vsyncadd [#allocation6], %s173
          %s176 = sshll.u32 [#allocation5], 4
          %s177 = int_to_ptr.vmem [resolvable:$true] %s176
          %179 = dma.hbm_to_vmem [thread:$0]  %s1, 128, %s177, [#allocation6]
        $region16: #{tpu_custom_call.1} parent=11 // pred_fallthru
          _
        // Predicated region
        $region17: #{tpu_custom_call.1} parent=11 // pred_check
          %p180 = pneg %p86
        $region18: #{tpu_custom_call.1} parent=11 // pred_check_branch
          %182 = sbr.rel (%p180) target = $region20
        $region19: #{tpu_custom_call.1} parent=11 // pred_region
          _
        $region20: #{tpu_custom_call.1} parent=11 // pred_fallthru
          _
        // Predicated region
        $region21: #{tpu_custom_call.1} parent=11 // pred_check
          %p183 = pneg %p107
        $region22: #{tpu_custom_call.1} parent=11 // pred_check_branch
          %185 = sbr.rel (%p183) target = $region24
        $region23: #{tpu_custom_call.1} parent=11 // pred_region
          _
        $region24: #{tpu_custom_call.1} parent=11 // pred_fallthru
          _
        // Predicated region
        $region25: #{tpu_custom_call.1} parent=11 // pred_check
          %p186 = pneg %p128
        $region26: #{tpu_custom_call.1} parent=11 // pred_check_branch
          %188 = sbr.rel (%p186) target = $region28
        $region27: #{tpu_custom_call.1} parent=11 // pred_region
          _
        $region28: #{tpu_custom_call.1} parent=11 // pred_fallthru
          _
      $region12: #{tpu_custom_call.1} parent=5 // pred_fallthru
        _
      %p189 = scmp.lt.s32.totalorder %s18, 2
      // Predicated region
      $region29: #{tpu_custom_call.1} parent=5 // pred_check
        %p190 = pneg %p189
      $region30: #{tpu_custom_call.1} parent=5 // pred_check_branch
        %192 = sbr.rel (%p190) target = $region32
      $region31: #{tpu_custom_call.1} parent=5 // pred_region
        // Predicated region
        $region33: #{tpu_custom_call.1} parent=31 // pred_check
          %p193 = pneg %p38
        $region34: #{tpu_custom_call.1} parent=31 // pred_check_branch
          %195 = sbr.rel (%p193) target = $region36
        $region35: #{tpu_custom_call.1} parent=31 // pred_region
          %s196 = sand.u32 %s28, 1
          %s197 = scalar_lea.sflag [#allocation3], %s196
          %s198 = sand.u32 %s28, 1
          %s199 = smul.addr %s198, 16
          %s200 = scalar_lea.vmem [#allocation2], %s199
          %s202 = ssub.s32 256, 256
          %203 = vsyncadd %s197, %s202
          %s204 = smul.addr %s18, 2
          %s205 = smul.addr %s204, 128
          %s206 = scalar_lea.hbm %s0, %s205
          %s208 = sshll.u32 %s200, 4
          %s209 = int_to_ptr.vmem [resolvable:$true] %s208
          %211 = dma.hbm_to_vmem [thread:$0]  %s206, 256, %s209, %s197
        $region36: #{tpu_custom_call.1} parent=31 // pred_fallthru
          _
      $region32: #{tpu_custom_call.1} parent=5 // pred_fallthru
        _
      %p212 = scmp.le.s32.totalorder 1, %s18
      %p213 = scmp.lt.s32.totalorder %s18, 3
      %p214 = pnand %p212, %p213
      %p215 = pneg %p214
      // Predicated region
      $region37: #{tpu_custom_call.1} parent=5 // pred_check
        _
      $region38: #{tpu_custom_call.1} parent=5 // pred_check_branch
        %217 = sbr.rel (%p214) target = $region40
      $region39: #{tpu_custom_call.1} parent=5 // pred_region
        %s218 = ssub.s32 %s18, 1
        %s219 = sand.u32 %s31, 1
        %s220 = scalar_lea.sflag [#allocation3], %s219
        %s221 = sand.u32 %s31, 1
        %s222 = smul.addr %s221, 16
        %s223 = scalar_lea.vmem [#allocation2], %s222
        // Predicated region
        $region41: #{tpu_custom_call.1} parent=39 // pred_check
          %p224 = pneg %p44
        $region42: #{tpu_custom_call.1} parent=39 // pred_check_branch
          %226 = sbr.rel (%p224) target = $region44
        $region43: #{tpu_custom_call.1} parent=39 // pred_region
          %227 = dma.done %s220, 256
        $region44: #{tpu_custom_call.1} parent=39 // pred_fallthru
          _
        // Predicated region
        $region45: #{tpu_custom_call.1} parent=39 // pred_check
          %p228 = pneg %p65
        $region46: #{tpu_custom_call.1} parent=39 // pred_check_branch
          %230 = sbr.rel (%p228) target = $region48
        $region47: #{tpu_custom_call.1} parent=39 // pred_region
          %231 = dma.done [#allocation6], 128
        $region48: #{tpu_custom_call.1} parent=39 // pred_fallthru
          _
        %s232 = sand.u32 %s31, 1
        %s233 = scalar_lea.sflag [#allocation3], %s232
        %s234 = sand.u32 %s31, 1
        %s235 = smul.addr %s234, 16
        %s236 = scalar_lea.vmem [#allocation2], %s235
        %p237 = pneg %p44
        %p238 = pneg %p41
        %p239 = pneg %p65
        %p240 = pneg %p62
        %p241 = pneg %p86
        %p242 = pneg %p83
        %p243 = pneg %p107
        %p244 = pneg %p104
        %p245 = pneg %p128
        %p246 = pneg %p125
        %p247 = pneg %p154
        %p248 = pneg %p151
        %s249 = sand.u32 %s141, 1
        %s250 = scalar_lea.sflag [#allocation4], %s249
        %s251 = sand.u32 %s141, 1
        %s252 = smul.addr %s251, 16
        %s253 = scalar_lea.vmem [#allocation7], %s252
        %v254 = vld [vmem:[%s223] sm:$0xff]
        %v255 = vld [vmem:[%s223 + $0x8] sm:$0xff]
        %v256 = vadd.f32 %v254, %v255
        %257 = vadd.xlane.f32.xlu0 %v256
        %v258 = vpop.xlane.xlu0 %257
        %v259 = vmul.f32 %v258, 0.00390625
        %v260 = vld [vmem:[#allocation5] sm:$0xff]
        %v261 = vld [vmem:[%s2] sm:$0x1]
        %v263 = vlaneseq
        %v264 = vand.u32 %v263, 127
        %v265 = vlaneseq
        %v266 = vshrl.u32 %v265, 7
        %v267 = vsub.s32 %v264, %v266
        %v268 = vrot.slane %v259, %v267
        %vm269 = vcmask 64512
        %v270 = vsel %vm269, %v268, 0
        %272 = vmatprep.subr.mxu0 0.0
        %273 = vmatpush1.msra.mxu0 %v260
        %274 = vmatprep.subr.mxu0 0.0
        %275 = vmatpush1.msra.mxu0 0.0
        %276 = vmatprep.subr.mxu0 0.0
        %277 = vmatpush1.msra.mxu0 0.0
        %278 = vmatprep.subr.mxu0 0.0
        %279 = vmatpush1.msra.mxu0 0.0
        %280 = vmatprep.subr.mxu0 0.0
        %281 = vmatpush1.msra.mxu0 0.0
        %282 = vmatprep.subr.mxu0 0.0
        %283 = vmatpush1.msra.mxu0 0.0
        %284 = vmatprep.subr.mxu0 0.0
        %285 = vmatpush1.msra.mxu0 0.0
        %286 = vmatprep.subr.mxu0 0.0
        %287 = vmatpush1.msra.mxu0 0.0
        %288 = vmatprep.subr.mxu0 0.0
        %289 = vmatpush1.msra.mxu0 0.0
        %290 = vmatprep.subr.mxu0 0.0
        %291 = vmatpush1.msra.mxu0 0.0
        %292 = vmatprep.subr.mxu0 0.0
        %293 = vmatpush1.msra.mxu0 0.0
        %294 = vmatprep.subr.mxu0 0.0
        %295 = vmatpush1.msra.mxu0 0.0
        %296 = vmatprep.subr.mxu0 0.0
        %297 = vmatpush1.msra.mxu0 0.0
        %298 = vmatprep.subr.mxu0 0.0
        %299 = vmatpush1.msra.mxu0 0.0
        %300 = vmatprep.subr.mxu0 0.0
        %301 = vmatpush1.msra.mxu0 0.0
        %302 = vmatprep.subr.mxu0 0.0
        %303 = vmatpush1.msra.mxu0 0.0
        %304 = vmatprep.subr.mxu0 0.0
        %305 = vmatpush1.msra.mxu0 0.0
        %306 = vmatprep.subr.mxu0 0.0
        %307 = vmatpush1.msra.mxu0 0.0
        %308 = vmatprep.subr.mxu0 0.0
        %309 = vmatpush1.msra.mxu0 0.0
        %310 = vmatprep.subr.mxu0 0.0
        %311 = vmatpush1.msra.mxu0 0.0
        %312 = vmatprep.subr.mxu0 0.0
        %313 = vmatpush1.msra.mxu0 0.0
        %314 = vmatprep.subr.mxu0 0.0
        %315 = vmatpush1.msra.mxu0 0.0
        %316 = vmatprep.subr.mxu0 0.0
        %317 = vmatpush1.msra.mxu0 0.0
        %318 = vmatprep.subr.mxu0 0.0
        %319 = vmatpush1.msra.mxu0 0.0
        %320 = vmatprep.subr.mxu0 0.0
        %321 = vmatpush1.msra.mxu0 0.0
        %322 = vmatprep.subr.mxu0 0.0
        %323 = vmatpush1.msra.mxu0 0.0
        %324 = vmatprep.subr.mxu0 0.0
        %325 = vmatpush1.msra.mxu0 0.0
        %326 = vmatprep.subr.mxu0 0.0
        %327 = vmatpush1.msra.mxu0 0.0
        %328 = vmatprep.subr.mxu0 0.0
        %329 = vmatpush1.msra.mxu0 0.0
        %330 = vmatprep.subr.mxu0 0.0
        %331 = vmatpush1.msra.mxu0 0.0
        %332 = vmatprep.subr.mxu0 0.0
        %333 = vmatpush1.msra.mxu0 0.0
        %334 = vmatprep.subr.mxu0 0.0
        %335 = vmatpush1.msra.mxu0 0.0
        %336 = vmatprep.mubr.f32.mxu0 0.0
        %337 = vmatmul.mubr.f32.gmra.mrb[0].mxu0 %v270
        %v338 = vpop.f32.mrb[0].mxu0
        %v339 = vadd.f32 %v261, %v338
        %v340 = vpop.f32.mrb[0].mxu0
        %341 = vdwg.mxu0
        %v342 = vmax.f32 %v339, 0.0
        %v343 = vld [vmem:[%s3] sm:$0xff]
        %v344 = vld [vmem:[%s4] sm:$0x1]
        %v346 = vsel %vm269, %v342, 0
        %348 = vmatprep.subr.mxu0 0.0
        %349 = vmatpush1.msra.mxu0 %v343
        %350 = vmatprep.subr.mxu0 0.0
        %351 = vmatpush1.msra.mxu0 0.0
        %352 = vmatprep.subr.mxu0 0.0
        %353 = vmatpush1.msra.mxu0 0.0
        %354 = vmatprep.subr.mxu0 0.0
        %355 = vmatpush1.msra.mxu0 0.0
        %356 = vmatprep.subr.mxu0 0.0
        %357 = vmatpush1.msra.mxu0 0.0
        %358 = vmatprep.subr.mxu0 0.0
        %359 = vmatpush1.msra.mxu0 0.0
        %360 = vmatprep.subr.mxu0 0.0
        %361 = vmatpush1.msra.mxu0 0.0
        %362 = vmatprep.subr.mxu0 0.0
        %363 = vmatpush1.msra.mxu0 0.0
        %364 = vmatprep.subr.mxu0 0.0
        %365 = vmatpush1.msra.mxu0 0.0
        %366 = vmatprep.subr.mxu0 0.0
        %367 = vmatpush1.msra.mxu0 0.0
        %368 = vmatprep.subr.mxu0 0.0
        %369 = vmatpush1.msra.mxu0 0.0
        %370 = vmatprep.subr.mxu0 0.0
        %371 = vmatpush1.msra.mxu0 0.0
        %372 = vmatprep.subr.mxu0 0.0
        %373 = vmatpush1.msra.mxu0 0.0
        %374 = vmatprep.subr.mxu0 0.0
        %375 = vmatpush1.msra.mxu0 0.0
        %376 = vmatprep.subr.mxu0 0.0
        %377 = vmatpush1.msra.mxu0 0.0
        %378 = vmatprep.subr.mxu0 0.0
        %379 = vmatpush1.msra.mxu0 0.0
        %380 = vmatprep.subr.mxu0 0.0
        %381 = vmatpush1.msra.mxu0 0.0
        %382 = vmatprep.subr.mxu0 0.0
        %383 = vmatpush1.msra.mxu0 0.0
        %384 = vmatprep.subr.mxu0 0.0
        %385 = vmatpush1.msra.mxu0 0.0
        %386 = vmatprep.subr.mxu0 0.0
        %387 = vmatpush1.msra.mxu0 0.0
        %388 = vmatprep.subr.mxu0 0.0
        %389 = vmatpush1.msra.mxu0 0.0
        %390 = vmatprep.subr.mxu0 0.0
        %391 = vmatpush1.msra.mxu0 0.0
        %392 = vmatprep.subr.mxu0 0.0
        %393 = vmatpush1.msra.mxu0 0.0
        %394 = vmatprep.subr.mxu0 0.0
        %395 = vmatpush1.msra.mxu0 0.0
        %396 = vmatprep.subr.mxu0 0.0
        %397 = vmatpush1.msra.mxu0 0.0
        %398 = vmatprep.subr.mxu0 0.0
        %399 = vmatpush1.msra.mxu0 0.0
        %400 = vmatprep.subr.mxu0 0.0
        %401 = vmatpush1.msra.mxu0 0.0
        %402 = vmatprep.subr.mxu0 0.0
        %403 = vmatpush1.msra.mxu0 0.0
        %404 = vmatprep.subr.mxu0 0.0
        %405 = vmatpush1.msra.mxu0 0.0
        %406 = vmatprep.subr.mxu0 0.0
        %407 = vmatpush1.msra.mxu0 0.0
        %408 = vmatprep.subr.mxu0 0.0
        %409 = vmatpush1.msra.mxu0 0.0
        %410 = vmatprep.subr.mxu0 0.0
        %411 = vmatpush1.msra.mxu0 0.0
        %412 = vmatprep.mubr.f32.mxu0 0.0
        %413 = vmatmul.mubr.f32.gmra.mrb[0].mxu0 %v346
        %v414 = vpop.f32.mrb[0].mxu0
        %v415 = vadd.f32 %v344, %v414
        %v416 = vpop.f32.mrb[0].mxu0
        %417 = vdwg.mxu0
        %v418 = vxor.u32 %v415, 2147483648
        %v419 = vmul.f32 %v418, 1.442695
        %v420 = vpow.pop %v419
        %v421 = vadd.f32 %v420, 1.0
        %v422 = vrcp.pop %v421
        %v423 = vmul.f32 1.0, %v422
        %v424 = vlaneseq
        %v425 = vshrl.u32 %v424, 7
        %v426 = vsub.s32 0, %v425
        %v427 = vrot.slane %v423, %v426
        %429 = vbcast.lane.b32.xlu0 %v427, 256
        %v430 = vpop.permute.xlu0 %429
        %v431 = vmul.f32 %v254, %v430
        %v432 = vmul.f32 %v255, %v430
        %433 = vst [vmem:[%s253] sm:$0xff] %v431
        %434 = vst [vmem:[%s253 + $0x8] sm:$0xff] %v432
        %s435 = sand.u32 %s141, 1
        %s436 = scalar_lea.sflag [#allocation4], %s435
        %s437 = sand.u32 %s141, 1
        %s438 = smul.addr %s437, 16
        %s439 = scalar_lea.vmem [#allocation7], %s438
        // Predicated region
        $region49: #{tpu_custom_call.1} parent=39 // pred_check
          %p440 = pneg %p151
        $region50: #{tpu_custom_call.1} parent=39 // pred_check_branch
          %442 = sbr.rel (%p440) target = $region52
        $region51: #{tpu_custom_call.1} parent=39 // pred_region
          %s444 = ssub.s32 256, 256
          %445 = vsyncadd %s436, %s444
          %s446 = smul.addr %s23, 2
          %s447 = smul.addr %s446, 128
          %s448 = scalar_lea.hbm %s5, %s447
          %s450 = sshll.u32 %s439, 4
          %s451 = int_to_ptr.vmem [resolvable:$true] %s450
          %453 = dma.vmem_to_hbm [thread:$0]  %s451, 256, %s448, %s436
        $region52: #{tpu_custom_call.1} parent=39 // pred_fallthru
          _
      $region40: #{tpu_custom_call.1} parent=5 // pred_fallthru
        _
      %p454 = scmp.le.s32.totalorder 2, %s18
      // Predicated region
      $region53: #{tpu_custom_call.1} parent=5 // pred_check
        %p455 = pneg %p454
      $region54: #{tpu_custom_call.1} parent=5 // pred_check_branch
        %457 = sbr.rel (%p455) target = $region56
      $region55: #{tpu_custom_call.1} parent=5 // pred_region
        %s458 = ssub.s32 %s18, 2
        // Predicated region
        $region57: #{tpu_custom_call.1} parent=55 // pred_check
          %p459 = pneg %p157
        $region58: #{tpu_custom_call.1} parent=55 // pred_check_branch
          %461 = sbr.rel (%p459) target = $region60
        $region59: #{tpu_custom_call.1} parent=55 // pred_region
          %s462 = sand.u32 %s142, 1
          %s463 = scalar_lea.sflag [#allocation4], %s462
          %s464 = sand.u32 %s142, 1
          %s465 = smul.addr %s464, 16
          %s466 = scalar_lea.vmem [#allocation7], %s465
          %467 = dma.done %s463, 256
        $region60: #{tpu_custom_call.1} parent=55 // pred_fallthru
          _
      $region56: #{tpu_custom_call.1} parent=5 // pred_fallthru
        _
    $region6: #{tpu_custom_call.1} parent=1 // loop_footer
      %s22 = sadd.s32 1, %s18
    $region7: #{tpu_custom_call.1} parent=1 // loop_footer_branch
      %17 = sbr.rel target = $region3
    $region8: #{tpu_custom_call.1} parent=1 // loop_exit
      _
    %468 = vsyncpa [#allocation3], 1
    %s469 = scalar_lea.sflag [#allocation3], 1
    %470 = vsyncpa %s469, 1
    %471 = vsyncpa [#allocation6], 1
    %472 = vsyncpa [#allocation4], 1
    %s473 = scalar_lea.sflag [#allocation4], 1
    %474 = vsyncpa %s473, 1

</llo_original>
